<compile_context>
chip_gen: v5e
topology: v5e:2x2
jax: 0.10.0
libtpu: 0.0.40
codegen_flags: <defaults>
</compile_context>

<pallas_src>
import functools

import jax
import jax.numpy as jnp
from jax.experimental import pallas as pl
from jax.experimental.pallas import tpu as pltpu

GAMMA = 1.25   # deterministic parameters of the synthetic transform f
BETA = -0.1

_LANE = 128            # lane width (last dim of the slab)
_MAX_ROW_BLOCK = 2048  # 2048 * 128 * 4 B = 1 MiB per f32 block


def _affine_clip_kernel(x_ref, o_ref, *, gamma, beta):
    """Unconditional elementwise f(x) = clip(x * gamma + beta, 0, 1)."""
    o_ref[...] = jnp.clip(x_ref[...] * gamma + beta, 0.0, 1.0)


def _round_up(n, m):
    return ((n + m - 1) // m) * m


def _apply_f_pallas(x):
    """Streams f(x) over the whole tensor with a tiled Pallas kernel."""
    orig_shape = x.shape
    total = x.size

    # Flatten to a lane-dense (rows, 128) slab; pad rows to a sublane- and
    # block-aligned count so every grid step sees a full (row_block, 128) tile.
    rows = _round_up(pl.cdiv(total, _LANE), 8)
    if rows > _MAX_ROW_BLOCK:
        row_block = _MAX_ROW_BLOCK
        rows = _round_up(rows, row_block)
    else:
        row_block = rows
    padded_total = rows * _LANE

    flat = x.reshape(-1)
    if padded_total != total:
        flat = jnp.pad(flat, (0, padded_total - total))
    x2 = flat.reshape(rows, _LANE)

    kernel = functools.partial(_affine_clip_kernel, gamma=GAMMA, beta=BETA)

    out2 = pl.pallas_call(
        kernel,
        out_shape=jax.ShapeDtypeStruct((rows, _LANE), jnp.float32),
        grid=(rows // row_block,),
        in_specs=[pl.BlockSpec((row_block, _LANE), lambda i: (i, 0))],
        out_specs=pl.BlockSpec((row_block, _LANE), lambda i: (i, 0)),
        compiler_params=pltpu.CompilerParams(
            dimension_semantics=("parallel",)),
    )(x2)

    if padded_total != total:
        return out2.reshape(-1)[:total].reshape(orig_shape)
    return out2.reshape(orig_shape)


@functools.partial(jax.jit, static_argnames=("p",))
def prob_transform(x, key, p=1.0):
    """Pallas implementation of ProbTransform.forward.

    x:   NCHW tensor (computed in float32).
    key: jax PRNG key used for the single Bernoulli coin (stand-in for
         Python's random.random()).
    p:   probability of applying f (static, as in the module constructor).
    """
    x = x.astype(jnp.float32)
    if p >= 1.0:
        # random.random() < 1.0 is always True -> always apply f.
        return _apply_f_pallas(x)
    if p <= 0.0:
        # random.random() < 0.0 is always False -> identity, zero cost.
        return x
    coin = jax.random.uniform(key, ()) < jnp.float32(p)
    # Identity branch is free: no kernel launch, no HBM traffic.
    return jax.lax.cond(coin, _apply_f_pallas, lambda t: t, x)


def _reference(x, key, p):
    coin = jax.random.uniform(key, ()) < p
    fx = jnp.clip(x * GAMMA + BETA, 0.0, 1.0)
    return jnp.where(coin, fx, x)


if __name__ == "__main__":
    key = jax.random.PRNGKey(0)
    kx, kcoin = jax.random.split(key)

    # NCHW input, small shapes: batch=2, channels=4, spatial=16x16.
    x = jax.random.uniform(kx, (2, 4, 16, 16), dtype=jnp.float32)

    # p = 1.0 -> f is always applied.
    y1 = jax.block_until_ready(prob_transform(x, kcoin, p=1.0))
    ref1 = _reference(x, kcoin, 1.0)
    assert y1.shape == x.shape and y1.dtype == x.dtype
    assert jnp.allclose(y1, ref1, atol=1e-6), "p=1.0 branch mismatch"

    # p = 0.0 -> identity.
    y0 = jax.block_until_ready(prob_transform(x, kcoin, p=0.0))
    assert jnp.allclose(y0, x, atol=0.0), "p=0.0 branch mismatch"

    # Fractional p: must match the reference coin exactly.
    yp = jax.block_until_ready(prob_transform(x, kcoin, p=0.5))
    refp = _reference(x, kcoin, 0.5)
    assert jnp.allclose(yp, refp, atol=1e-6), "p=0.5 branch mismatch"

    # Non-multiple-of-1024 element count (exercises the padding path).
    xr = jax.random.uniform(kx, (1, 3, 10, 17), dtype=jnp.float32)
    yr = jax.block_until_ready(prob_transform(xr, kcoin, p=1.0))
    assert jnp.allclose(yr, _reference(xr, kcoin, 1.0), atol=1e-6), "ragged mismatch"

    print("KERNEL_OK")
</pallas_src>

<mosaic_0001>
module attributes {stable_mosaic.version = 11 : i64} {
  func.func @_affine_clip_kernel(%arg0: i32, %arg1: memref<16x128xf32, #tpu.memory_space<vmem>>, %arg2: memref<16x128xf32, #tpu.memory_space<vmem>>) attributes {dimension_semantics = [#tpu.dimension_semantics<parallel>], iteration_bounds = array<i64: 1>, scalar_prefetch = 0 : i64, scratch_operands = 0 : i64, tpu.core_type = #tpu.core_type<tc>, window_params = [{transform_indices = @transform_0, window_bounds = array<i64: 16, 128>}, {transform_indices = @transform_1, window_bounds = array<i64: 16, 128>}]} {
    %c0 = arith.constant 0 : index
    %c0_0 = arith.constant 0 : index
    %0 = vector.load %arg1[%c0, %c0_0] : memref<16x128xf32, #tpu.memory_space<vmem>>, vector<16x128xf32>
    %cst = arith.constant 1.250000e+00 : f32
    %1 = vector.broadcast %cst : f32 to vector<16x128xf32>
    %2 = arith.mulf %0, %1 : vector<16x128xf32>
    %cst_1 = arith.constant -1.000000e-01 : f32
    %3 = vector.broadcast %cst_1 : f32 to vector<16x128xf32>
    %4 = arith.addf %2, %3 : vector<16x128xf32>
    %cst_2 = arith.constant 0.000000e+00 : f32
    %cst_3 = arith.constant 1.000000e+00 : f32
    %5 = vector.broadcast %cst_2 : f32 to vector<16x128xf32>
    %6 = arith.maximumf %5, %4 : vector<16x128xf32>
    %7 = vector.broadcast %cst_3 : f32 to vector<16x128xf32>
    %8 = arith.minimumf %7, %6 : vector<16x128xf32>
    %c0_4 = arith.constant 0 : index
    %c0_5 = arith.constant 0 : index
    %9 = vector.load %arg2[%c0_4, %c0_5] : memref<16x128xf32, #tpu.memory_space<vmem>>, vector<16x128xf32>
    tpu.vector_store %arg2[%c0_4, %c0_5], %8 {strides = array<i32>} : memref<16x128xf32, #tpu.memory_space<vmem>>, vector<16x128xf32>,
    return
  }
  func.func @transform_0(%arg0: i32) -> (i32, i32) {
    %c0_i32 = arith.constant 0 : i32
    %c0_i32_0 = arith.constant 0 : i32
    return %arg0, %c0_i32 : i32, i32
  }
  func.func @transform_1(%arg0: i32) -> (i32, i32) {
    %c0_i32 = arith.constant 0 : i32
    %c0_i32_0 = arith.constant 0 : i32
    return %arg0, %c0_i32 : i32, i32
  }
}

</mosaic_0001>

<llo_original>
// kernel: prob_transform.1
$region0: #{prob_transform.1}
  #allocation0 [shape = 'u32[]', space=smem, size = 0x4, offset = 0x4, fixed_abs, tag = 'smem constant byte address 0x4 - core index']
  #allocation1 [shape = 'u32[72,128]{1,0:T(1,128)}', space=vmem, size = 0x9000, scoped, tag = 'internal scratch']
  %s0 = inlined_call_operand.vmem [shape: f32[16,128], index: 0, kind: input, shape index: {}]
  %s1 = inlined_call_operand.vmem [shape: f32[16,128], index: 1, kind: output, shape index: {}]
  %s2 = sld [smem:[#allocation0]]
  $region14: #{prob_transform.1} parent=0
    _
  %s4 = ssub.s32 1, %s2
  %s5 = scalar_select 0, %s4, %s2
  // Predicated region
  $region2: #{prob_transform.1} parent=0 // pred_check
    _
  $region3: #{prob_transform.1} parent=0 // pred_check_branch
    %7 = sbr.rel (0) target = $region5
  $region4: #{prob_transform.1} parent=0 // pred_region
    _
  $region5: #{prob_transform.1} parent=0 // pred_fallthru
    _
  %v8 = vld [vmem:[%s0] sm:$0xff]
  %v9 = vld [vmem:[%s0 + $0x8] sm:$0xff]
  %v10 = vmul.f32 %v8, 1.25
  %v11 = vmul.f32 %v9, 1.25
  %v12 = vadd.f32 %v10, -0.1
  %v13 = vadd.f32 %v11, -0.1
  %v14 = vmax.f32 %v12, 0.0
  %v15 = vmax.f32 %v13, 0.0
  %v16 = vmin.f32 %v14, 1.0
  %v17 = vmin.f32 %v15, 1.0
  %18 = vst [vmem:[%s1] sm:$0xff] %v16
  %19 = vst [vmem:[%s1 + $0x8] sm:$0xff] %v17
  // Predicated region
  $region6: #{prob_transform.1} parent=0 // pred_check
    _
  $region7: #{prob_transform.1} parent=0 // pred_check_branch
    %21 = sbr.rel (0) target = $region9
  $region8: #{prob_transform.1} parent=0 // pred_region
    _
  $region9: #{prob_transform.1} parent=0 // pred_fallthru
    _
  // Predicated region
  $region10: #{prob_transform.1} parent=0 // pred_check
    _
  $region11: #{prob_transform.1} parent=0 // pred_check_branch
    %23 = sbr.rel (0) target = $region13
  $region12: #{prob_transform.1} parent=0 // pred_region
    _
  $region13: #{prob_transform.1} parent=0 // pred_fallthru
    _

</llo_original>
